<compile_context>
chip_gen: v7x
topology: tpu7x:2x2x1
jax: 0.10.0
libtpu: 0.0.40
codegen_flags: <defaults>
</compile_context>

<pallas_src>
import functools

import jax
import jax.numpy as jnp
import numpy as np
from jax.experimental import pallas as pl
from jax.experimental.pallas import tpu as pltpu  # noqa: F401  (TPU backend assumed)

EPS = 1e-5   # nn.BatchNorm1d default eps
PAD = 128    # lane width of the packed parameter slab / output


def _align8(n):
    return (n + 7) & ~7


def _slab_offsets(C, L, H):
    """Row offsets of each section inside the packed parameter slab (all 8-aligned)."""
    r_cs = _align8(C * L)          # gate-weight colsums        (C rows)
    r_b = _align8(r_cs + C)        # fused gate bias b_ih+b_hh  (1 row)
    r_cfw = _align8(r_b + 1)       # cf_w^T                     (H rows)
    r_cfb = _align8(r_cfw + H)     # cf_b                       (1 row)
    r_p = _align8(r_cfb + 1)       # per-channel scalars        (1 row)
    total = _align8(r_p + 1)
    return r_cs, r_b, r_cfw, r_cfb, r_p, total


# ----------------------------- Single fused kernel ---------------------------------------------
def _fused_kernel(x_ref, slab_ref, o_ref, *, C, L, H):
    # x_ref    : (B, L)        raw input (single conv channel)
    # slab_ref : (TOTAL, 128)  packed params: [W_ih^T(i|g|o) | colsums | bias | cf_w^T | cf_b | p]
    # o_ref    : (B, 128)      lane-dense output, lanes >= O are zero
    B = x_ref.shape[0]
    CL = C * L
    R_CS, R_B, R_CFW, R_CFB, R_P, _ = _slab_offsets(C, L, H)

    x = x_ref[...]                                               # (B, L) f32
    inv_n = 1.0 / float(B * L)
    row_s = jnp.sum(x, axis=1, keepdims=True)                    # (B, 1)
    row_ss = jnp.sum(x * x, axis=1, keepdims=True)               # (B, 1)
    mu = jnp.sum(row_s, axis=0, keepdims=True) * inv_n           # (1, 1) batch mean of x
    ex2 = jnp.sum(row_ss, axis=0, keepdims=True) * inv_n         # (1, 1)
    var = jnp.maximum(ex2 - mu * mu, 0.0)                        # biased variance, clamped >= 0

    prow = slab_ref[R_P:R_P + 1, :]                              # (1, 128) [cw_c | gamma_c | beta_c]
    cs = slab_ref[R_CS:R_CS + C, :]                              # (C, 128) gate-weight colsums
    b_eff = slab_ref[R_B:R_B + 1, :]                             # (1, 128) b_ih + b_hh (i|g|o)

    chunks = []
    for c in range(C):                                           # C = 4, fully unrolled
        cw = prow[:, c:c + 1]                                    # (1, 1)
        gm = prow[:, C + c:C + c + 1]
        bb = prow[:, 2 * C + c:2 * C + c + 1]
        alpha = gm * cw * jax.lax.rsqrt(cw * cw * var + EPS)     # (1, 1)
        beta = bb - alpha * mu                                   # (1, 1)
        chunks.append(alpha * x)                                 # (B, L) == BN(conv(x))_c - beta_c
        b_eff = b_eff + beta * cs[c:c + 1, :]                    # fold beta into the gate bias
    xs = jnp.concatenate(chunks, axis=1)                         # (B, C*L) flattened activations

    # Single MXU contraction: (B, C*L) @ (C*L, 128); lanes >= 3H of the weights are zero.
    gates = jnp.dot(xs, slab_ref[0:CL, :],
                    preferred_element_type=jnp.float32) + b_eff  # (B, 128), order i | g | o

    i = jax.nn.sigmoid(gates[:, 0:H])
    g = jnp.tanh(gates[:, H:2 * H])
    o = jax.nn.sigmoid(gates[:, 2 * H:3 * H])
    h = o * jnp.tanh(i * g)                                      # c0 = 0  =>  c_new = i * g

    o_ref[...] = jnp.dot(h, slab_ref[R_CFW:R_CFW + H, :],
                         preferred_element_type=jnp.float32) + slab_ref[R_CFB:R_CFB + 1, :]


# -------------------------- One-time, x-independent parameter packing --------------------------
def prepare_params(params):
    """Pack all weights into one lane-dense slab. Call ONCE; result is reused every forward."""
    C = params["conv_w"].shape[0]
    H = params["lstm_w_ih"].shape[0] // 4
    O = params["cf_w"].shape[0]
    CL = params["lstm_w_ih"].shape[1]
    L = CL // C
    G = 3 * H
    R_CS, R_B, R_CFW, R_CFB, R_P, TOTAL = _slab_offsets(C, L, H)

    # Keep only the i, g, o gate columns (forget gate multiplies c0 == 0).
    sel = np.concatenate([np.arange(0, H), np.arange(2 * H, 3 * H), np.arange(3 * H, 4 * H)])
    w_t = jnp.asarray(params["lstm_w_ih"], jnp.float32).T[:, sel]        # (C*L, 3H)
    colsums = w_t.reshape(C, L, G).sum(axis=1)                           # (C, 3H)
    bias = (jnp.asarray(params["lstm_b_ih"], jnp.float32)
            + jnp.asarray(params["lstm_b_hh"], jnp.float32))[sel].reshape(1, G)

    slab = jnp.zeros((TOTAL, PAD), jnp.float32)
    slab = slab.at[0:CL, 0:G].set(w_t)
    slab = slab.at[R_CS:R_CS + C, 0:G].set(colsums)
    slab = slab.at[R_B:R_B + 1, 0:G].set(bias)
    slab = slab.at[R_CFW:R_CFW + H, 0:O].set(jnp.asarray(params["cf_w"], jnp.float32).T)
    slab = slab.at[R_CFB:R_CFB + 1, 0:O].set(
        jnp.asarray(params["cf_b"], jnp.float32).reshape(1, O))
    prow = jnp.concatenate([jnp.asarray(params["conv_w"], jnp.float32).reshape(C),
                            jnp.asarray(params["bn_w"], jnp.float32).reshape(C),
                            jnp.asarray(params["bn_b"], jnp.float32).reshape(C)]).reshape(1, 3 * C)
    slab = slab.at[R_P:R_P + 1, 0:3 * C].set(prow)   # conv bias cancels inside BatchNorm

    return {"slab": slab, "C": C, "H": H, "O": O}


# ---------------------------------------- Hot path ---------------------------------------------
@functools.partial(jax.jit, static_argnames=("C", "H", "O"))
def _forward_jit(x, slab, *, C, H, O):
    B, cin, L = x.shape
    assert cin == 1, "Conv1d expects 1 input channel"
    x2 = x.reshape(B, L).astype(jnp.float32)

    out = pl.pallas_call(
        functools.partial(_fused_kernel, C=C, L=L, H=H),
        grid=(1,),
        in_specs=[
            pl.BlockSpec((B, L), lambda i: (0, 0)),
            pl.BlockSpec(slab.shape, lambda i: (0, 0)),
        ],
        out_specs=pl.BlockSpec((B, PAD), lambda i: (0, 0)),
        out_shape=jax.ShapeDtypeStruct((B, PAD), jnp.float32),
    )(x2, slab)

    return out[:, :O].reshape(-1)   # .flatten()


def model_forward(x, packed):
    return _forward_jit(x, packed["slab"], C=packed["C"], H=packed["H"], O=packed["O"])


# ------------------------------------- Pure-JAX reference --------------------------------------
def reference_forward(x, params):
    B, _, L = x.shape
    C = params["conv_w"].shape[0]
    H = params["lstm_w_ih"].shape[0] // 4
    cw = params["conv_w"].reshape(1, C, 1)
    cb = params["conv_b"].reshape(1, C, 1)
    y = cw * x + cb                                              # Conv1d(1, C, kernel_size=1)
    mu = y.mean(axis=(0, 2), keepdims=True)                      # BatchNorm1d training-mode stats
    var = ((y - mu) ** 2).mean(axis=(0, 2), keepdims=True)       # biased variance
    y = params["bn_w"].reshape(1, C, 1) * (y - mu) / jnp.sqrt(var + EPS) \
        + params["bn_b"].reshape(1, C, 1)
    xf = y.reshape(B, -1)
    gates = xf @ params["lstm_w_ih"].T + params["lstm_b_ih"] + params["lstm_b_hh"]
    i = jax.nn.sigmoid(gates[:, 0:H])
    g = jnp.tanh(gates[:, 2 * H:3 * H])
    o = jax.nn.sigmoid(gates[:, 3 * H:4 * H])
    h = o * jnp.tanh(i * g)                                      # h0 = c0 = 0
    return (h @ params["cf_w"].T + params["cf_b"]).reshape(-1)


if __name__ == "__main__":
    # Model hyper-params: input_dim=C=4, hidden_dim=H=32, output_dim=O=4.
    # LSTMCell input size is hard-coded to 400 => C * L = 400 => L = 100.
    B, C, L, H, O = 2, 4, 100, 32, 4
    key = jax.random.PRNGKey(0)
    ks = jax.random.split(key, 10)

    params = {
        "conv_w":    0.3 * jax.random.normal(ks[0], (C, 1, 1), jnp.float32),
        "conv_b":    0.1 * jax.random.normal(ks[1], (C,), jnp.float32),
        "bn_w":      1.0 + 0.1 * jax.random.normal(ks[2], (C,), jnp.float32),
        "bn_b":      0.1 * jax.random.normal(ks[3], (C,), jnp.float32),
        "lstm_w_ih": 0.05 * jax.random.normal(ks[4], (4 * H, C * L), jnp.float32),
        "lstm_b_ih": 0.05 * jax.random.normal(ks[5], (4 * H,), jnp.float32),
        "lstm_b_hh": 0.05 * jax.random.normal(ks[6], (4 * H,), jnp.float32),
        # lstm_w_hh (4H, H) exists in nn.LSTMCell but multiplies h0 == 0, so it is omitted.
        "cf_w":      0.1 * jax.random.normal(ks[7], (O, H), jnp.float32),
        "cf_b":      0.1 * jax.random.normal(ks[8], (O,), jnp.float32),
    }
    # TODO(synk): self.dropout is stored by the module but never applied in forward(); omitted.

    x = jax.random.normal(ks[9], (B, 1, L), jnp.float32)

    packed = prepare_params(params)          # one-time weight packing (hoisted out of hot path)

    out = jax.block_until_ready(model_forward(x, packed))
    ref = jax.block_until_ready(reference_forward(x, params))

    np.testing.assert_allclose(np.asarray(out), np.asarray(ref), rtol=1e-4, atol=1e-4)
    assert out.shape == (B * O,)
    print("KERNEL_OK")
</pallas_src>

<mosaic_0001>
module attributes {stable_mosaic.version = 11 : i64} {
  func.func @_fused_kernel(%arg0: i32, %arg1: memref<2x100xf32, #tpu.memory_space<vmem>>, %arg2: memref<464x128xf32, #tpu.memory_space<vmem>>, %arg3: memref<2x128xf32, #tpu.memory_space<vmem>>) attributes {dimension_semantics = [#tpu.dimension_semantics<arbitrary>], iteration_bounds = array<i64: 1>, scalar_prefetch = 0 : i64, scratch_operands = 0 : i64, tpu.core_type = #tpu.core_type<tc>, window_params = [{pipeline_mode = #tpu.pipeline_mode<synchronous>, transform_indices = @transform_0, window_bounds = array<i64: 2, 100>}, {pipeline_mode = #tpu.pipeline_mode<synchronous>, transform_indices = @transform_1, window_bounds = array<i64: 464, 128>}, {pipeline_mode = #tpu.pipeline_mode<synchronous>, transform_indices = @transform_2, window_bounds = array<i64: 2, 128>}]} {
    %c0 = arith.constant 0 : index
    %c0_0 = arith.constant 0 : index
    %0 = vector.load %arg1[%c0, %c0_0] : memref<2x100xf32, #tpu.memory_space<vmem>>, vector<2x100xf32>
    %cst = arith.constant dense<0.000000e+00> : vector<2xf32>
    %1 = vector.multi_reduction <add>, %0, %cst [1] : vector<2x100xf32> to vector<2xf32>
    %2 = vector.shape_cast %1 : vector<2xf32> to vector<2x1xf32>
    %3 = arith.mulf %0, %0 : vector<2x100xf32>
    %cst_1 = arith.constant dense<0.000000e+00> : vector<2xf32>
    %4 = vector.multi_reduction <add>, %3, %cst_1 [1] : vector<2x100xf32> to vector<2xf32>
    %5 = vector.shape_cast %4 : vector<2xf32> to vector<2x1xf32>
    %cst_2 = arith.constant dense<0.000000e+00> : vector<1xf32>
    %6 = vector.multi_reduction <add>, %2, %cst_2 [0] : vector<2x1xf32> to vector<1xf32>
    %7 = vector.shape_cast %6 : vector<1xf32> to vector<1x1xf32>
    %cst_3 = arith.constant 5.000000e-03 : f32
    %8 = vector.broadcast %cst_3 : f32 to vector<1x1xf32>
    %9 = arith.mulf %7, %8 : vector<1x1xf32>
    %cst_4 = arith.constant dense<0.000000e+00> : vector<1xf32>
    %10 = vector.multi_reduction <add>, %5, %cst_4 [0] : vector<2x1xf32> to vector<1xf32>
    %11 = vector.shape_cast %10 : vector<1xf32> to vector<1x1xf32>
    %cst_5 = arith.constant 5.000000e-03 : f32
    %12 = vector.broadcast %cst_5 : f32 to vector<1x1xf32>
    %13 = arith.mulf %11, %12 : vector<1x1xf32>
    %14 = arith.mulf %9, %9 : vector<1x1xf32>
    %15 = arith.subf %13, %14 : vector<1x1xf32>
    %cst_6 = arith.constant 0.000000e+00 : f32
    %16 = vector.broadcast %cst_6 : f32 to vector<1x1xf32>
    %17 = arith.maximumf %15, %16 : vector<1x1xf32>
    %c456 = arith.constant 456 : index
    %c0_7 = arith.constant 0 : index
    %18 = vector.load %arg2[%c456, %c0_7] : memref<464x128xf32, #tpu.memory_space<vmem>>, vector<1x128xf32>
    %c400 = arith.constant 400 : index
    %c0_8 = arith.constant 0 : index
    %19 = vector.load %arg2[%c400, %c0_8] : memref<464x128xf32, #tpu.memory_space<vmem>>, vector<4x128xf32>
    %c408 = arith.constant 408 : index
    %c0_9 = arith.constant 0 : index
    %20 = vector.load %arg2[%c408, %c0_9] : memref<464x128xf32, #tpu.memory_space<vmem>>, vector<1x128xf32>
    %21 = vector.extract_strided_slice %18 {offsets = [0, 0], sizes = [1, 1], strides = [1, 1]} : vector<1x128xf32> to vector<1x1xf32>
    %22 = vector.extract_strided_slice %18 {offsets = [0, 4], sizes = [1, 1], strides = [1, 1]} : vector<1x128xf32> to vector<1x1xf32>
    %23 = vector.extract_strided_slice %18 {offsets = [0, 8], sizes = [1, 1], strides = [1, 1]} : vector<1x128xf32> to vector<1x1xf32>
    %24 = arith.mulf %22, %21 : vector<1x1xf32>
    %25 = arith.mulf %21, %21 : vector<1x1xf32>
    %26 = arith.mulf %25, %17 : vector<1x1xf32>
    %cst_10 = arith.constant 9.99999974E-6 : f32
    %27 = vector.broadcast %cst_10 : f32 to vector<1x1xf32>
    %28 = arith.addf %26, %27 : vector<1x1xf32>
    %29 = math.rsqrt %28 : vector<1x1xf32>
    %30 = arith.mulf %24, %29 : vector<1x1xf32>
    %31 = arith.mulf %30, %9 : vector<1x1xf32>
    %32 = arith.subf %23, %31 : vector<1x1xf32>
    %33 = vector.broadcast %30 : vector<1x1xf32> to vector<2x100xf32>
    %34 = arith.mulf %33, %0 : vector<2x100xf32>
    %35 = vector.extract_strided_slice %19 {offsets = [0, 0], sizes = [1, 128], strides = [1, 1]} : vector<4x128xf32> to vector<1x128xf32>
    %36 = vector.broadcast %32 : vector<1x1xf32> to vector<1x128xf32>
    %37 = arith.mulf %36, %35 : vector<1x128xf32>
    %38 = arith.addf %20, %37 : vector<1x128xf32>
    %39 = vector.extract_strided_slice %18 {offsets = [0, 1], sizes = [1, 1], strides = [1, 1]} : vector<1x128xf32> to vector<1x1xf32>
    %40 = vector.extract_strided_slice %18 {offsets = [0, 5], sizes = [1, 1], strides = [1, 1]} : vector<1x128xf32> to vector<1x1xf32>
    %41 = vector.extract_strided_slice %18 {offsets = [0, 9], sizes = [1, 1], strides = [1, 1]} : vector<1x128xf32> to vector<1x1xf32>
    %42 = arith.mulf %40, %39 : vector<1x1xf32>
    %43 = arith.mulf %39, %39 : vector<1x1xf32>
    %44 = arith.mulf %43, %17 : vector<1x1xf32>
    %cst_11 = arith.constant 9.99999974E-6 : f32
    %45 = vector.broadcast %cst_11 : f32 to vector<1x1xf32>
    %46 = arith.addf %44, %45 : vector<1x1xf32>
    %47 = math.rsqrt %46 : vector<1x1xf32>
    %48 = arith.mulf %42, %47 : vector<1x1xf32>
    %49 = arith.mulf %48, %9 : vector<1x1xf32>
    %50 = arith.subf %41, %49 : vector<1x1xf32>
    %51 = vector.broadcast %48 : vector<1x1xf32> to vector<2x100xf32>
    %52 = arith.mulf %51, %0 : vector<2x100xf32>
    %53 = vector.extract_strided_slice %19 {offsets = [1, 0], sizes = [1, 128], strides = [1, 1]} : vector<4x128xf32> to vector<1x128xf32>
    %54 = vector.broadcast %50 : vector<1x1xf32> to vector<1x128xf32>
    %55 = arith.mulf %54, %53 : vector<1x128xf32>
    %56 = arith.addf %38, %55 : vector<1x128xf32>
    %57 = vector.extract_strided_slice %18 {offsets = [0, 2], sizes = [1, 1], strides = [1, 1]} : vector<1x128xf32> to vector<1x1xf32>
    %58 = vector.extract_strided_slice %18 {offsets = [0, 6], sizes = [1, 1], strides = [1, 1]} : vector<1x128xf32> to vector<1x1xf32>
    %59 = vector.extract_strided_slice %18 {offsets = [0, 10], sizes = [1, 1], strides = [1, 1]} : vector<1x128xf32> to vector<1x1xf32>
    %60 = arith.mulf %58, %57 : vector<1x1xf32>
    %61 = arith.mulf %57, %57 : vector<1x1xf32>
    %62 = arith.mulf %61, %17 : vector<1x1xf32>
    %cst_12 = arith.constant 9.99999974E-6 : f32
    %63 = vector.broadcast %cst_12 : f32 to vector<1x1xf32>
    %64 = arith.addf %62, %63 : vector<1x1xf32>
    %65 = math.rsqrt %64 : vector<1x1xf32>
    %66 = arith.mulf %60, %65 : vector<1x1xf32>
    %67 = arith.mulf %66, %9 : vector<1x1xf32>
    %68 = arith.subf %59, %67 : vector<1x1xf32>
    %69 = vector.broadcast %66 : vector<1x1xf32> to vector<2x100xf32>
    %70 = arith.mulf %69, %0 : vector<2x100xf32>
    %71 = vector.extract_strided_slice %19 {offsets = [2, 0], sizes = [1, 128], strides = [1, 1]} : vector<4x128xf32> to vector<1x128xf32>
    %72 = vector.broadcast %68 : vector<1x1xf32> to vector<1x128xf32>
    %73 = arith.mulf %72, %71 : vector<1x128xf32>
    %74 = arith.addf %56, %73 : vector<1x128xf32>
    %75 = vector.extract_strided_slice %18 {offsets = [0, 3], sizes = [1, 1], strides = [1, 1]} : vector<1x128xf32> to vector<1x1xf32>
    %76 = vector.extract_strided_slice %18 {offsets = [0, 7], sizes = [1, 1], strides = [1, 1]} : vector<1x128xf32> to vector<1x1xf32>
    %77 = vector.extract_strided_slice %18 {offsets = [0, 11], sizes = [1, 1], strides = [1, 1]} : vector<1x128xf32> to vector<1x1xf32>
    %78 = arith.mulf %76, %75 : vector<1x1xf32>
    %79 = arith.mulf %75, %75 : vector<1x1xf32>
    %80 = arith.mulf %79, %17 : vector<1x1xf32>
    %cst_13 = arith.constant 9.99999974E-6 : f32
    %81 = vector.broadcast %cst_13 : f32 to vector<1x1xf32>
    %82 = arith.addf %80, %81 : vector<1x1xf32>
    %83 = math.rsqrt %82 : vector<1x1xf32>
    %84 = arith.mulf %78, %83 : vector<1x1xf32>
    %85 = arith.mulf %84, %9 : vector<1x1xf32>
    %86 = arith.subf %77, %85 : vector<1x1xf32>
    %87 = vector.broadcast %84 : vector<1x1xf32> to vector<2x100xf32>
    %88 = arith.mulf %87, %0 : vector<2x100xf32>
    %89 = vector.extract_strided_slice %19 {offsets = [3, 0], sizes = [1, 128], strides = [1, 1]} : vector<4x128xf32> to vector<1x128xf32>
    %90 = vector.broadcast %86 : vector<1x1xf32> to vector<1x128xf32>
    %91 = arith.mulf %90, %89 : vector<1x128xf32>
    %92 = arith.addf %74, %91 : vector<1x128xf32>
    %93 = tpu.concatenate %34, %52, %70, %88 in 1 : vector<2x100xf32>, vector<2x100xf32>, vector<2x100xf32>, vector<2x100xf32> -> vector<2x400xf32>
    %c0_14 = arith.constant 0 : index
    %c0_15 = arith.constant 0 : index
    %94 = vector.load %arg2[%c0_14, %c0_15] : memref<464x128xf32, #tpu.memory_space<vmem>>, vector<400x128xf32>
    %cst_16 = arith.constant dense<0.000000e+00> : vector<2x128xf32>
    %95 = tpu.matmul %93, %94, %cst_16 {dimension_numbers = #tpu.dot_dimension_numbers<[1], [0], [0], [1], [0, 0, 1, 1], [], []>} : vector<2x400xf32>, vector<400x128xf32>, vector<2x128xf32> -> vector<2x128xf32>
    %96 = vector.broadcast %92 : vector<1x128xf32> to vector<2x128xf32>
    %97 = arith.addf %95, %96 : vector<2x128xf32>
    %98 = vector.extract_strided_slice %97 {offsets = [0, 0], sizes = [2, 32], strides = [1, 1]} : vector<2x128xf32> to vector<2x32xf32>
    %99 = arith.negf %98 : vector<2x32xf32>
    %100 = math.exp %99 : vector<2x32xf32>
    %cst_17 = arith.constant 1.000000e+00 : f32
    %101 = vector.broadcast %cst_17 : f32 to vector<2x32xf32>
    %102 = arith.addf %101, %100 : vector<2x32xf32>
    %103 = arith.divf %101, %102 : vector<2x32xf32>
    %104 = vector.extract_strided_slice %97 {offsets = [0, 32], sizes = [2, 32], strides = [1, 1]} : vector<2x128xf32> to vector<2x32xf32>
    %105 = math.tanh %104 : vector<2x32xf32>
    %106 = vector.extract_strided_slice %97 {offsets = [0, 64], sizes = [2, 32], strides = [1, 1]} : vector<2x128xf32> to vector<2x32xf32>
    %107 = arith.negf %106 : vector<2x32xf32>
    %108 = math.exp %107 : vector<2x32xf32>
    %cst_18 = arith.constant 1.000000e+00 : f32
    %109 = vector.broadcast %cst_18 : f32 to vector<2x32xf32>
    %110 = arith.addf %109, %108 : vector<2x32xf32>
    %111 = arith.divf %109, %110 : vector<2x32xf32>
    %112 = arith.mulf %103, %105 : vector<2x32xf32>
    %113 = math.tanh %112 : vector<2x32xf32>
    %114 = arith.mulf %111, %113 : vector<2x32xf32>
    %c416 = arith.constant 416 : index
    %c0_19 = arith.constant 0 : index
    %115 = vector.load %arg2[%c416, %c0_19] : memref<464x128xf32, #tpu.memory_space<vmem>>, vector<32x128xf32>
    %cst_20 = arith.constant dense<0.000000e+00> : vector<2x128xf32>
    %116 = tpu.matmul %114, %115, %cst_20 {dimension_numbers = #tpu.dot_dimension_numbers<[1], [0], [0], [1], [0, 0, 1, 1], [], []>} : vector<2x32xf32>, vector<32x128xf32>, vector<2x128xf32> -> vector<2x128xf32>
    %c448 = arith.constant 448 : index
    %c0_21 = arith.constant 0 : index
    %117 = vector.load %arg2[%c448, %c0_21] : memref<464x128xf32, #tpu.memory_space<vmem>>, vector<1x128xf32>
    %118 = vector.broadcast %117 : vector<1x128xf32> to vector<2x128xf32>
    %119 = arith.addf %116, %118 : vector<2x128xf32>
    %c0_22 = arith.constant 0 : index
    %c0_23 = arith.constant 0 : index
    %120 = vector.load %arg3[%c0_22, %c0_23] : memref<2x128xf32, #tpu.memory_space<vmem>>, vector<2x128xf32>
    tpu.vector_store %arg3[%c0_22, %c0_23], %119 {strides = array<i32>} : memref<2x128xf32, #tpu.memory_space<vmem>>, vector<2x128xf32>,
    return
  }
  func.func @transform_0(%arg0: i32) -> (i32, i32) {
    %c0_i32 = arith.constant 0 : i32
    %c0_i32_0 = arith.constant 0 : i32
    %c0_i32_1 = arith.constant 0 : i32
    return %c0_i32, %c0_i32_0 : i32, i32
  }
  func.func @transform_1(%arg0: i32) -> (i32, i32) {
    %c0_i32 = arith.constant 0 : i32
    %c0_i32_0 = arith.constant 0 : i32
    %c0_i32_1 = arith.constant 0 : i32
    return %c0_i32, %c0_i32_0 : i32, i32
  }
  func.func @transform_2(%arg0: i32) -> (i32, i32) {
    %c0_i32 = arith.constant 0 : i32
    %c0_i32_0 = arith.constant 0 : i32
    %c0_i32_1 = arith.constant 0 : i32
    return %c0_i32, %c0_i32_0 : i32, i32
  }
}

</mosaic_0001>

<llo_original>
// kernel: _forward_jit.1
$region0: #{_forward_jit.1}
  #allocation0 [shape = 'u32[]', space=smem, size = 0x4, offset = 0x4, fixed_abs, tag = 'smem constant byte address 0x4 - core index']
  #allocation1 [shape = 'u32[144,128]{1,0:T(1,128)}', space=vmem, size = 0x12000, scoped, tag = 'internal scratch']
  %s0 = inlined_call_operand.vmem [shape: f32[2,100], index: 0, kind: input, shape index: {}]
  %s1 = inlined_call_operand.hbm [shape: f32[464,128], index: 1, kind: input, shape index: {}]
  %s2 = inlined_call_operand.vmem [shape: f32[2,128], index: 2, kind: output, shape index: {}]
  %s3 = sld [smem:[#allocation0]]
  $region22: #{_forward_jit.1} parent=0
    _
  %s5 = ssub.s32 1, %s3
  %s6 = scalar_select 0, %s5, %s3
  $region1: #{_forward_jit.1} parent=0
    #allocation2 [shape = 'u8[237568]{0}', space=vmem, size = 0x3a000, scoped, tag = 'input window, operand 1, single buffered']
    #allocation3 [shape = 's32[1]{0}', space=sflag, size = 0x4, scoped, tag = 'scoped memory for _forward_jit.1']
    %7 = vsyncpa [#allocation3], 0
    // Predicated region
    $region2: #{_forward_jit.1} parent=1 // pred_check
      _
    $region3: #{_forward_jit.1} parent=1 // pred_check_branch
      %9 = sbr.rel (0) target = $region5
    $region4: #{_forward_jit.1} parent=1 // pred_region
      _
    $region5: #{_forward_jit.1} parent=1 // pred_fallthru
      _
    // Predicated region
    $region6: #{_forward_jit.1} parent=1 // pred_check
      _
    $region7: #{_forward_jit.1} parent=1 // pred_check_branch
      %11 = sbr.rel (0) target = $region9
    $region8: #{_forward_jit.1} parent=1 // pred_region
      %s13 = ssub.s32 7424, 7424
      %14 = vsyncadd [#allocation3], %s13
      %s15 = sshll.u32 [#allocation2], 4
      %s16 = int_to_ptr.vmem [resolvable:$true] %s15
      %21 = dma.hbm_to_vmem [thread:$0]  %s1, 7424, %s16, [#allocation3], 128, 128, 8
    $region9: #{_forward_jit.1} parent=1 // pred_fallthru
      _
    // Predicated region
    $region10: #{_forward_jit.1} parent=1 // pred_check
      _
    $region11: #{_forward_jit.1} parent=1 // pred_check_branch
      %23 = sbr.rel (0) target = $region13
    $region12: #{_forward_jit.1} parent=1 // pred_region
      %24 = dma.done [#allocation3], 7424
    $region13: #{_forward_jit.1} parent=1 // pred_fallthru
      _
    %v25 = vld [vmem:[%s0] sm:$0x3]
    %vm26 = vcmask 812032
    %v27 = vsel %vm26, %v25, 0.0
    %28 = vadd.xlane.f32.xlu0 %v27
    %v29 = vpop.xlane.xlu0 %28
    %v30 = vmul.f32 %v25, %v25
    %v31 = vsel %vm26, %v30, 0.0
    %32 = vadd.xlane.f32.xlu0 %v31
    %v33 = vpop.xlane.xlu0 %32
    %vm34 = vcmask 1041408
    %v35 = vsel %vm34, %v29, 0.0
    %v36 = vrot.slane %v35, 4
    %v37 = vadd.f32 %v35, %v36
    %v38 = vrot.slane %v37, 2
    %v39 = vadd.f32 %v37, %v38
    %v40 = vrot.slane %v39, 1
    %v41 = vadd.f32 %v39, %v40
    %v42 = vmul.f32 %v41, 0.005
    %v43 = vsel %vm34, %v33, 0.0
    %v44 = vrot.slane %v43, 4
    %v45 = vadd.f32 %v43, %v44
    %v46 = vrot.slane %v45, 2
    %v47 = vadd.f32 %v45, %v46
    %v48 = vrot.slane %v47, 1
    %v49 = vadd.f32 %v47, %v48
    %v50 = vmul.f32 %v49, 0.005
    %v51 = vmul.f32 %v42, %v42
    %v52 = vsub.f32 %v50, %v51
    %v53 = vmax.f32 %v52, 0.0
    %v54 = vld [vmem:[#allocation2 + $0x1c8] sm:$0x1]
    %v55 = vld [vmem:[#allocation2 + $0x190] sm:$0xf]
    %v56 = vld [vmem:[#allocation2 + $0x198] sm:$0x1]
    %58 = vrot.lane.b32.xlu0 %v54, 4
    %v59 = vpop.permute.xlu0 %58
    %v61 = vmul.f32 %v54, %v59
    %v62 = vmul.f32 %v54, %v54
    %v63 = vmul.f32 %v62, %v53
    %v64 = vadd.f32 %v63, 1e-05
    %v65 = vrsqrt.pop %v64
    %67 = vrot.lane.b32.xlu0 %v65, 4
    %v68 = vpop.permute.xlu0 %67
    %v70 = vmul.f32 %v61, %v68
    %v71 = vmul.f32 %v70, %v42
    %73 = vrot.lane.b32.xlu0 %v71, 4
    %v74 = vpop.permute.xlu0 %73
    %v76 = vsub.f32 %v54, %v74
    %78 = vrot.lane.b32.xlu0 %v70, 124
    %v79 = vpop.permute.xlu0 %78
    %s80 = vtos %v79
    %v81 = vstv %s80
    %v83 = vmul.f32 %v81, %v25
    %85 = vset.pattern.permute.xlu0 8
    %86 = vperm.xlu0 %85, %v76
    %v87 = vpop.permute.xlu0 %86
    %v89 = vmul.f32 %v87, %v55
    %v90 = vadd.f32 %v56, %v89
    %91 = vrot.lane.b32.xlu0 %v70, 123
    %v92 = vpop.permute.xlu0 %91
    %s93 = vtos %v92
    %v94 = vstv %s93
    %v96 = vmul.f32 %v94, %v25
    %97 = vset.pattern.permute.xlu0 9
    %98 = vperm.xlu0 %97, %v76
    %v99 = vpop.permute.xlu0 %98
    %v102 = vrot.slane %v55, 1
    %v104 = vmul.f32 %v99, %v102
    %v105 = vadd.f32 %v90, %v104
    %106 = vrot.lane.b32.xlu0 %v70, 122
    %v107 = vpop.permute.xlu0 %106
    %s108 = vtos %v107
    %v109 = vstv %s108
    %v111 = vmul.f32 %v109, %v25
    %112 = vset.pattern.permute.xlu0 10
    %113 = vperm.xlu0 %112, %v76
    %v114 = vpop.permute.xlu0 %113
    %v116 = vrot.slane %v55, 2
    %v118 = vmul.f32 %v114, %v116
    %v119 = vadd.f32 %v105, %v118
    %120 = vrot.lane.b32.xlu0 %v70, 121
    %v121 = vpop.permute.xlu0 %120
    %s122 = vtos %v121
    %v123 = vstv %s122
    %v125 = vmul.f32 %v123, %v25
    %126 = vset.pattern.permute.xlu0 11
    %127 = vperm.xlu0 %126, %v76
    %v128 = vpop.permute.xlu0 %127
    %v130 = vrot.slane %v55, 3
    %v132 = vmul.f32 %v128, %v130
    %v133 = vadd.f32 %v119, %v132
    %135 = vrot.lane.b32.xlu0 %v96, 100
    %v136 = vpop.permute.xlu0 %135
    %139 = vrot.lane.b32.xlu0 %v111, 72
    %v140 = vpop.permute.xlu0 %139
    %143 = vrot.lane.b32.xlu0 %v125, 44
    %v144 = vpop.permute.xlu0 %143
    %vm146 = vcmask 818176
    %v147 = vsel %vm146, %v83, %v136
    %vm148 = vcmask 588800
    %v149 = vsel %vm148, %v136, %v140
    %vm150 = vcmask 359424
    %v151 = vsel %vm150, %v140, %v144
    %v152 = vld [vmem:[#allocation2] sm:$0xff]
    %v153 = vld [vmem:[#allocation2 + $0x8] sm:$0xff]
    %v154 = vld [vmem:[#allocation2 + $0x10] sm:$0xff]
    %v155 = vld [vmem:[#allocation2 + $0x18] sm:$0xff]
    %v156 = vld [vmem:[#allocation2 + $0x20] sm:$0xff]
    %v157 = vld [vmem:[#allocation2 + $0x28] sm:$0xff]
    %v158 = vld [vmem:[#allocation2 + $0x30] sm:$0xff]
    %v159 = vld [vmem:[#allocation2 + $0x38] sm:$0xff]
    %v160 = vld [vmem:[#allocation2 + $0x40] sm:$0xff]
    %v161 = vld [vmem:[#allocation2 + $0x48] sm:$0xff]
    %v162 = vld [vmem:[#allocation2 + $0x50] sm:$0xff]
    %v163 = vld [vmem:[#allocation2 + $0x58] sm:$0xff]
    %v164 = vld [vmem:[#allocation2 + $0x60] sm:$0xff]
    %v165 = vld [vmem:[#allocation2 + $0x68] sm:$0xff]
    %v166 = vld [vmem:[#allocation2 + $0x70] sm:$0xff]
    %v167 = vld [vmem:[#allocation2 + $0x78] sm:$0xff]
    %v168 = vld [vmem:[#allocation2 + $0x80] sm:$0xff]
    %v169 = vld [vmem:[#allocation2 + $0x88] sm:$0xff]
    %v170 = vld [vmem:[#allocation2 + $0x90] sm:$0xff]
    %v171 = vld [vmem:[#allocation2 + $0x98] sm:$0xff]
    %v172 = vld [vmem:[#allocation2 + $0xa0] sm:$0xff]
    %v173 = vld [vmem:[#allocation2 + $0xa8] sm:$0xff]
    %v174 = vld [vmem:[#allocation2 + $0xb0] sm:$0xff]
    %v175 = vld [vmem:[#allocation2 + $0xb8] sm:$0xff]
    %v176 = vld [vmem:[#allocation2 + $0xc0] sm:$0xff]
    %v177 = vld [vmem:[#allocation2 + $0xc8] sm:$0xff]
    %v178 = vld [vmem:[#allocation2 + $0xd0] sm:$0xff]
    %v179 = vld [vmem:[#allocation2 + $0xd8] sm:$0xff]
    %v180 = vld [vmem:[#allocation2 + $0xe0] sm:$0xff]
    %v181 = vld [vmem:[#allocation2 + $0xe8] sm:$0xff]
    %v182 = vld [vmem:[#allocation2 + $0xf0] sm:$0xff]
    %v183 = vld [vmem:[#allocation2 + $0xf8] sm:$0xff]
    %v184 = vld [vmem:[#allocation2 + $0x100] sm:$0xff]
    %v185 = vld [vmem:[#allocation2 + $0x108] sm:$0xff]
    %v186 = vld [vmem:[#allocation2 + $0x110] sm:$0xff]
    %v187 = vld [vmem:[#allocation2 + $0x118] sm:$0xff]
    %v188 = vld [vmem:[#allocation2 + $0x120] sm:$0xff]
    %v189 = vld [vmem:[#allocation2 + $0x128] sm:$0xff]
    %v190 = vld [vmem:[#allocation2 + $0x130] sm:$0xff]
    %v191 = vld [vmem:[#allocation2 + $0x138] sm:$0xff]
    %v192 = vld [vmem:[#allocation2 + $0x140] sm:$0xff]
    %v193 = vld [vmem:[#allocation2 + $0x148] sm:$0xff]
    %v194 = vld [vmem:[#allocation2 + $0x150] sm:$0xff]
    %v195 = vld [vmem:[#allocation2 + $0x158] sm:$0xff]
    %v196 = vld [vmem:[#allocation2 + $0x160] sm:$0xff]
    %v197 = vld [vmem:[#allocation2 + $0x168] sm:$0xff]
    %v198 = vld [vmem:[#allocation2 + $0x170] sm:$0xff]
    %v199 = vld [vmem:[#allocation2 + $0x178] sm:$0xff]
    %v200 = vld [vmem:[#allocation2 + $0x180] sm:$0xff]
    %v201 = vld [vmem:[#allocation2 + $0x188] sm:$0xff]
    %v202 = vlaneseq
    %v203 = vshrl.u32 %v202, 7
    %v204 = vsub.s32 0, %v203
    %v205 = vrot.slane %v133, %v204
    %vm206 = vcmask 130048
    %v207 = vsel %vm206, %v144, 0
    %209 = vmatprep.subr.mxu0 0.0
    %210 = vmatpush1.msra.mxu0 %v152
    %211 = vmatprep.subr.mxu0 0.0
    %212 = vmatpush1.msra.mxu0 %v153
    %213 = vmatprep.subr.mxu0 0.0
    %214 = vmatpush1.msra.mxu0 %v154
    %215 = vmatprep.subr.mxu0 0.0
    %216 = vmatpush1.msra.mxu0 %v155
    %217 = vmatprep.subr.mxu0 0.0
    %218 = vmatpush1.msra.mxu0 %v156
    %219 = vmatprep.subr.mxu0 0.0
    %220 = vmatpush1.msra.mxu0 %v157
    %221 = vmatprep.subr.mxu0 0.0
    %222 = vmatpush1.msra.mxu0 %v158
    %223 = vmatprep.subr.mxu0 0.0
    %224 = vmatpush1.msra.mxu0 %v159
    %225 = vmatprep.subr.mxu0 0.0
    %226 = vmatpush1.msra.mxu0 %v160
    %227 = vmatprep.subr.mxu0 0.0
    %228 = vmatpush1.msra.mxu0 %v161
    %229 = vmatprep.subr.mxu0 0.0
    %230 = vmatpush1.msra.mxu0 %v162
    %231 = vmatprep.subr.mxu0 0.0
    %232 = vmatpush1.msra.mxu0 %v163
    %233 = vmatprep.subr.mxu0 0.0
    %234 = vmatpush1.msra.mxu0 %v164
    %235 = vmatprep.subr.mxu0 0.0
    %236 = vmatpush1.msra.mxu0 %v165
    %237 = vmatprep.subr.mxu0 0.0
    %238 = vmatpush1.msra.mxu0 %v166
    %239 = vmatprep.subr.mxu0 0.0
    %240 = vmatpush1.msra.mxu0 %v167
    %241 = vmatprep.subr.mxu0 0.0
    %242 = vmatpush1.msra.mxu0 %v168
    %243 = vmatprep.subr.mxu0 0.0
    %244 = vmatpush1.msra.mxu0 %v169
    %245 = vmatprep.subr.mxu0 0.0
    %246 = vmatpush1.msra.mxu0 %v170
    %247 = vmatprep.subr.mxu0 0.0
    %248 = vmatpush1.msra.mxu0 %v171
    %249 = vmatprep.subr.mxu0 0.0
    %250 = vmatpush1.msra.mxu0 %v172
    %251 = vmatprep.subr.mxu0 0.0
    %252 = vmatpush1.msra.mxu0 %v173
    %253 = vmatprep.subr.mxu0 0.0
    %254 = vmatpush1.msra.mxu0 %v174
    %255 = vmatprep.subr.mxu0 0.0
    %256 = vmatpush1.msra.mxu0 %v175
    %257 = vmatprep.subr.mxu0 0.0
    %258 = vmatpush1.msra.mxu0 %v176
    %259 = vmatprep.subr.mxu0 0.0
    %260 = vmatpush1.msra.mxu0 %v177
    %261 = vmatprep.subr.mxu0 0.0
    %262 = vmatpush1.msra.mxu0 %v178
    %263 = vmatprep.subr.mxu0 0.0
    %264 = vmatpush1.msra.mxu0 %v179
    %265 = vmatprep.subr.mxu0 0.0
    %266 = vmatpush1.msra.mxu0 %v180
    %267 = vmatprep.subr.mxu0 0.0
    %268 = vmatpush1.msra.mxu0 %v181
    %269 = vmatprep.subr.mxu0 0.0
    %270 = vmatpush1.msra.mxu0 %v182
    %271 = vmatprep.subr.mxu0 0.0
    %272 = vmatpush1.msra.mxu0 %v183
    %273 = vmatprep.mubr.f32.mxu0 %v149
    %274 = vmatmul.mubr.f32.gmra.mrb[0].mxu0 %v147
    %v275 = vpop.f32.mrb[0].mxu0
    %v276 = vadd.f32 %v205, %v275
    %v277 = vpop.f32.mrb[0].mxu0
    %278 = vdwg.mxu0
    %279 = vmatprep.subr.mxu0 0.0
    %280 = vmatpush1.msra.mxu0 %v184
    %281 = vmatprep.subr.mxu0 0.0
    %282 = vmatpush1.msra.mxu0 %v185
    %283 = vmatprep.subr.mxu0 0.0
    %284 = vmatpush1.msra.mxu0 %v186
    %285 = vmatprep.subr.mxu0 0.0
    %286 = vmatpush1.msra.mxu0 %v187
    %287 = vmatprep.subr.mxu0 0.0
    %288 = vmatpush1.msra.mxu0 %v188
    %289 = vmatprep.subr.mxu0 0.0
    %290 = vmatpush1.msra.mxu0 %v189
    %291 = vmatprep.subr.mxu0 0.0
    %292 = vmatpush1.msra.mxu0 %v190
    %293 = vmatprep.subr.mxu0 0.0
    %294 = vmatpush1.msra.mxu0 %v191
    %295 = vmatprep.subr.mxu0 0.0
    %296 = vmatpush1.msra.mxu0 %v192
    %297 = vmatprep.subr.mxu0 0.0
    %298 = vmatpush1.msra.mxu0 %v193
    %299 = vmatprep.subr.mxu0 0.0
    %300 = vmatpush1.msra.mxu0 %v194
    %301 = vmatprep.subr.mxu0 0.0
    %302 = vmatpush1.msra.mxu0 %v195
    %303 = vmatprep.subr.mxu0 0.0
    %304 = vmatpush1.msra.mxu0 %v196
    %305 = vmatprep.subr.mxu0 0.0
    %306 = vmatpush1.msra.mxu0 %v197
    %307 = vmatprep.subr.mxu0 0.0
    %308 = vmatpush1.msra.mxu0 %v198
    %309 = vmatprep.subr.mxu0 0.0
    %310 = vmatpush1.msra.mxu0 %v199
    %311 = vmatprep.subr.mxu0 0.0
    %312 = vmatpush1.msra.mxu0 %v200
    %313 = vmatprep.subr.mxu0 0.0
    %314 = vmatpush1.msra.mxu0 %v201
    %315 = vmatprep.subr.mxu0 0.0
    %316 = vmatpush1.msra.mxu0 0.0
    %317 = vmatprep.subr.mxu0 0.0
    %318 = vmatpush1.msra.mxu0 0.0
    %319 = vmatprep.subr.mxu0 0.0
    %320 = vmatpush1.msra.mxu0 0.0
    %321 = vmatprep.subr.mxu0 0.0
    %322 = vmatpush1.msra.mxu0 0.0
    %323 = vmatprep.subr.mxu0 0.0
    %324 = vmatpush1.msra.mxu0 0.0
    %325 = vmatprep.subr.mxu0 0.0
    %326 = vmatpush1.msra.mxu0 0.0
    %327 = vmatprep.subr.mxu0 0.0
    %328 = vmatpush1.msra.mxu0 0.0
    %329 = vmatprep.subr.mxu0 0.0
    %330 = vmatpush1.msra.mxu0 0.0
    %331 = vmatprep.subr.mxu0 0.0
    %332 = vmatpush1.msra.mxu0 0.0
    %333 = vmatprep.subr.mxu0 0.0
    %334 = vmatpush1.msra.mxu0 0.0
    %335 = vmatprep.subr.mxu0 0.0
    %336 = vmatpush1.msra.mxu0 0.0
    %337 = vmatprep.subr.mxu0 0.0
    %338 = vmatpush1.msra.mxu0 0.0
    %339 = vmatprep.subr.mxu0 0.0
    %340 = vmatpush1.msra.mxu0 0.0
    %341 = vmatprep.subr.mxu0 0.0
    %342 = vmatpush1.msra.mxu0 0.0
    %343 = vmatprep.mubr.f32.mxu0 %v207
    %344 = vmatmul.mubr.f32.gmra.mrb[0].mxu0 %v151
    %v345 = vpop.f32.mrb[0].mxu0
    %v346 = vadd.f32 %v276, %v345
    %v347 = vpop.f32.mrb[0].mxu0
    %348 = vdwg.mxu0
    %v349 = vxor.u32 %v346, 2147483648
    %v350 = vmul.f32 %v349, 1.442695
    %v351 = vpow.pop %v350
    %v352 = vadd.f32 %v351, 1.0
    %v353 = vrcp.pop %v352
    %v354 = vmul.f32 1.0, %v353
    %v355 = vtanh.pop %v346
    %357 = vrot.lane.b32.xlu0 %v355, 96
    %v358 = vpop.permute.xlu0 %357
    %v360 = vmul.f32 %v354, %v358
    %v361 = vtanh.pop %v360
    %363 = vrot.lane.b32.xlu0 %v361, 64
    %v364 = vpop.permute.xlu0 %363
    %v366 = vmul.f32 %v354, %v364
    %v367 = vld [vmem:[#allocation2 + $0x1a0] sm:$0xff]
    %v368 = vld [vmem:[#allocation2 + $0x1a8] sm:$0xff]
    %v369 = vld [vmem:[#allocation2 + $0x1b0] sm:$0xff]
    %v370 = vld [vmem:[#allocation2 + $0x1b8] sm:$0xff]
    %v371 = vld [vmem:[#allocation2 + $0x1c0] sm:$0x1]
    %v372 = vlaneseq
    %v373 = vshrl.u32 %v372, 7
    %v374 = vsub.s32 0, %v373
    %v375 = vrot.slane %v371, %v374
    %377 = vrot.lane.b32.xlu0 %v366, 64
    %v378 = vpop.permute.xlu0 %377
    %vm379 = vcmask 261120
    %v380 = vsel %vm379, %v378, 0
    %382 = vmatprep.subr.mxu0 0.0
    %383 = vmatpush1.msra.mxu0 %v367
    %384 = vmatprep.subr.mxu0 0.0
    %385 = vmatpush1.msra.mxu0 %v368
    %386 = vmatprep.subr.mxu0 0.0
    %387 = vmatpush1.msra.mxu0 %v369
    %388 = vmatprep.subr.mxu0 0.0
    %389 = vmatpush1.msra.mxu0 %v370
    %390 = vmatprep.subr.mxu0 0.0
    %391 = vmatpush1.msra.mxu0 0.0
    %392 = vmatprep.subr.mxu0 0.0
    %393 = vmatpush1.msra.mxu0 0.0
    %394 = vmatprep.subr.mxu0 0.0
    %395 = vmatpush1.msra.mxu0 0.0
    %396 = vmatprep.subr.mxu0 0.0
    %397 = vmatpush1.msra.mxu0 0.0
    %398 = vmatprep.subr.mxu0 0.0
    %399 = vmatpush1.msra.mxu0 0.0
    %400 = vmatprep.subr.mxu0 0.0
    %401 = vmatpush1.msra.mxu0 0.0
    %402 = vmatprep.subr.mxu0 0.0
    %403 = vmatpush1.msra.mxu0 0.0
    %404 = vmatprep.subr.mxu0 0.0
    %405 = vmatpush1.msra.mxu0 0.0
    %406 = vmatprep.subr.mxu0 0.0
    %407 = vmatpush1.msra.mxu0 0.0
    %408 = vmatprep.subr.mxu0 0.0
    %409 = vmatpush1.msra.mxu0 0.0
    %410 = vmatprep.subr.mxu0 0.0
    %411 = vmatpush1.msra.mxu0 0.0
    %412 = vmatprep.subr.mxu0 0.0
    %413 = vmatpush1.msra.mxu0 0.0
    %414 = vmatprep.subr.mxu0 0.0
    %415 = vmatpush1.msra.mxu0 0.0
    %416 = vmatprep.subr.mxu0 0.0
    %417 = vmatpush1.msra.mxu0 0.0
    %418 = vmatprep.subr.mxu0 0.0
    %419 = vmatpush1.msra.mxu0 0.0
    %420 = vmatprep.subr.mxu0 0.0
    %421 = vmatpush1.msra.mxu0 0.0
    %422 = vmatprep.subr.mxu0 0.0
    %423 = vmatpush1.msra.mxu0 0.0
    %424 = vmatprep.subr.mxu0 0.0
    %425 = vmatpush1.msra.mxu0 0.0
    %426 = vmatprep.subr.mxu0 0.0
    %427 = vmatpush1.msra.mxu0 0.0
    %428 = vmatprep.subr.mxu0 0.0
    %429 = vmatpush1.msra.mxu0 0.0
    %430 = vmatprep.subr.mxu0 0.0
    %431 = vmatpush1.msra.mxu0 0.0
    %432 = vmatprep.subr.mxu0 0.0
    %433 = vmatpush1.msra.mxu0 0.0
    %434 = vmatprep.subr.mxu0 0.0
    %435 = vmatpush1.msra.mxu0 0.0
    %436 = vmatprep.subr.mxu0 0.0
    %437 = vmatpush1.msra.mxu0 0.0
    %438 = vmatprep.subr.mxu0 0.0
    %439 = vmatpush1.msra.mxu0 0.0
    %440 = vmatprep.subr.mxu0 0.0
    %441 = vmatpush1.msra.mxu0 0.0
    %442 = vmatprep.subr.mxu0 0.0
    %443 = vmatpush1.msra.mxu0 0.0
    %444 = vmatprep.subr.mxu0 0.0
    %445 = vmatpush1.msra.mxu0 0.0
    %446 = vmatprep.mubr.f32.mxu0 0.0
    %447 = vmatmul.mubr.f32.gmra.mrb[0].mxu0 %v380
    %v448 = vpop.f32.mrb[0].mxu0
    %v449 = vadd.f32 %v375, %v448
    %v450 = vpop.f32.mrb[0].mxu0
    %451 = vdwg.mxu0
    %452 = vst [vmem:[%s2] sm:$0x3] %v449
    // Predicated region
    $region14: #{_forward_jit.1} parent=1 // pred_check
      _
    $region15: #{_forward_jit.1} parent=1 // pred_check_branch
      %454 = sbr.rel (0) target = $region17
    $region16: #{_forward_jit.1} parent=1 // pred_region
      _
    $region17: #{_forward_jit.1} parent=1 // pred_fallthru
      _
    // Predicated region
    $region18: #{_forward_jit.1} parent=1 // pred_check
      _
    $region19: #{_forward_jit.1} parent=1 // pred_check_branch
      %456 = sbr.rel (0) target = $region21
    $region20: #{_forward_jit.1} parent=1 // pred_region
      _
    $region21: #{_forward_jit.1} parent=1 // pred_fallthru
      _
    %457 = vsyncpa [#allocation3], 1

</llo_original>
